<compile_context>
chip_gen: v7x
topology: tpu7x:2x2x1
jax: 0.10.0
libtpu: 0.0.40
codegen_flags: <defaults>
</compile_context>

<pallas_src>
import functools

import jax
import jax.numpy as jnp
from jax import lax
from jax.experimental import pallas as pl
from jax.experimental.pallas import tpu as pltpu

_BN_EPS = 1e-5
_HALO = 3                        # frame halo: covers 7x7 'same' conv and 3x3 pools
_NEG_BIG = 1e30                  # stands in for -inf MaxPool padding (NaN-safe)
_POOL_OPS = ("max", "avg", "id")  # l2_5, l2_6, l2_7

_VMEM = pl.BlockSpec(memory_space=pltpu.MemorySpace.VMEM)


# ----------------------------- lane-shift helper -----------------------------

@functools.lru_cache(maxsize=None)
def _roll_sign():
    """+1 if pltpu.roll matches np.roll (result[i] = x[i - shift]), else -1.

    Tiny one-off probe kernel, run eagerly (outside jit) so the convention is
    resolved once and the fused kernel is correct under either convention.
    """
    def k(x_ref, o_ref):
        o_ref[...] = pltpu.roll(x_ref[...], 1, axis=1)

    x = jnp.arange(8 * 128, dtype=jnp.float32).reshape(8, 128)
    y = pl.pallas_call(
        k,
        out_shape=jax.ShapeDtypeStruct((8, 128), jnp.float32),
        in_specs=[_VMEM],
        out_specs=_VMEM,
    )(x)
    return 1 if bool(jnp.array_equal(y, jnp.roll(x, 1, axis=1))) else -1


def _shift_minor(z, off, rp):
    """zs[:, i] = z[:, i + off]; wrap-around only touches masked frame/pad lanes."""
    if off == 0:
        return z
    return pltpu.roll(z, (_roll_sign() * (-off)) % rp, axis=1)


# ------------------------------ fused kernel ------------------------------

def _dart_kernel(*refs, plan, n_w, wp, rp):
    """All 7 branches fused: (BN->ReLU->mask->im2col->matmul)* [-> post-BN ->
    ReLU -> pool], prob pre-folded into weights, branch sum in registers,
    single lane-dense output store."""
    mask_ref, vecs_ref, x_ref = refs[0], refs[1], refs[2]
    w_refs = refs[3:3 + n_w]
    out_ref = refs[3 + n_w]
    col_ref = refs[3 + n_w + 1]          # (K_max, Rp) bf16 im2col scratch

    mask = mask_ref[...]                  # (1, Rp) validity mask (f32 0/1)
    x = x_ref[...]                        # (Cin, Rp) framed flattened input

    def vec(off, c):                      # (c, 1) slice of the packed vector array
        return vecs_ref[off:off + c, :]

    def conv_layer(act, spec):
        kh, kw, cin, cout_l, widx, s_off, t_off = spec
        # Folded BN affine + ReLU, then zero frame/halo rows == Conv2d 'same' zero pad.
        z = jnp.maximum(act * vec(s_off, cin) + vec(t_off, cin), 0.0) * mask
        if kh == 1 and kw == 1:
            rhs = z.astype(jnp.bfloat16)
        else:
            pad_h, pad_w = kh // 2, kw // 2
            t = 0
            for dy in range(kh):
                for dx in range(kw):
                    off = (dy - pad_h) * wp + (dx - pad_w)
                    col_ref[t * cin:(t + 1) * cin, :] = (
                        _shift_minor(z, off, rp).astype(jnp.bfloat16))
                    t += 1
            rhs = col_ref[0:kh * kw * cin, :]
        # One K = Cin*kh*kw bf16 matmul, f32 accumulate.  Conv bias is folded
        # into the next layer's BN shift (or the final prob-scaled bias add).
        return lax.dot_general(w_refs[widx][...], rhs,
                               dimension_numbers=(((1,), (0,)), ((), ())),
                               preferred_element_type=jnp.float32)

    acc = None
    for branch in plan:
        kind = branch[0]
        act = x
        if kind == "conv":                         # l2_1 .. l2_4
            for spec in branch[1]:
                act = conv_layer(act, spec)
            b_off, b_c = branch[2]
            contrib = act + vec(b_off, b_c)        # prob-folded final bias
        else:                                      # l2_5 .. l2_7
            act = conv_layer(act, branch[1])
            ps_off, pt_off, c = branch[2]          # prob-folded post-BN affine
            z = jnp.maximum(act * vec(ps_off, c) + vec(pt_off, c), 0.0)
            if kind == "max":                      # MaxPool2d(3, stride=1, padding=1)
                zp = z * mask - (1.0 - mask) * _NEG_BIG
                pooled = zp
                for dy in range(3):
                    for dx in range(3):
                        off = (dy - 1) * wp + (dx - 1)
                        if off != 0:
                            pooled = jnp.maximum(pooled, _shift_minor(zp, off, rp))
                contrib = pooled * mask
            elif kind == "avg":                    # AvgPool2d(3,1,1) count_include_pad
                zp = z * mask
                pooled = zp
                for dy in range(3):
                    for dx in range(3):
                        off = (dy - 1) * wp + (dx - 1)
                        if off != 0:
                            pooled = pooled + _shift_minor(zp, off, rp)
                contrib = pooled * (1.0 / 9.0)
            else:                                  # Identity
                contrib = z * mask
        acc = contrib if acc is None else acc + contrib

    out_ref[...] = acc                             # single lane-dense store


# ------------------------------ host-side packing ------------------------------

def _pack_params(params, prob):
    """Pack per-layer weights to (Cout, Cin*kh*kw) bf16, fold conv biases into
    the following BN shift, fold softmax(alpha)[i] into each branch's last
    weights/bias (conv) or post-BN affine (pool), and pack all per-channel
    vectors into one (rows, 1) f32 array.  Returns (weights, vecs, plan, k_max)
    with `plan` fully static (ints/strings only)."""
    weights, vec_chunks, plan = [], [], []
    vec_rows = 0
    k_max = 16

    def add_vec(v):
        nonlocal vec_rows
        c = int(v.shape[0])
        cp = ((c + 7) // 8) * 8                    # keep sublane offsets aligned
        vec_chunks.append(jnp.pad(v.reshape(c, 1).astype(jnp.float32),
                                  ((0, cp - c), (0, 0))))
        off = vec_rows
        vec_rows += cp
        return off

    def add_layer(p, prev_bias, w_scale):
        nonlocal k_max
        kh, kw, cin, cout = p["w"].shape
        assert kh // 2 <= _HALO and kw // 2 <= _HALO, "conv kernel exceeds halo"
        shift = p["shift"] if prev_bias is None else p["shift"] + prev_bias * p["scale"]
        w2 = jnp.transpose(p["w"], (3, 0, 1, 2)).reshape(cout, kh * kw * cin)
        if w_scale is not None:
            w2 = w2 * w_scale
        weights.append(w2.astype(jnp.bfloat16))
        if kh * kw > 1:
            k_max = max(k_max, kh * kw * cin)
        return (kh, kw, cin, cout, len(weights) - 1,
                add_vec(p["scale"]), add_vec(shift))

    for bi, blocks in enumerate(params["conv_branches"]):      # l2_1 .. l2_4
        specs, prev_b = [], None
        for li, p in enumerate(blocks):
            last = li == len(blocks) - 1
            specs.append(add_layer(p, prev_b, prob[bi] if last else None))
            prev_b = p["b"]
        cout = int(blocks[-1]["w"].shape[-1])
        b_off = add_vec(blocks[-1]["b"] * prob[bi])
        plan.append(("conv", tuple(specs), (b_off, cout)))

    for pi, (br, op) in enumerate(zip(params["pool_branches"], _POOL_OPS)):
        p = br["cb"]
        spec = add_layer(p, None, None)
        cout = int(p["w"].shape[-1])
        pr = prob[4 + pi]
        ps_off = add_vec(br["bn_scale"] * pr)
        pt_off = add_vec((br["bn_shift"] + p["b"] * br["bn_scale"]) * pr)
        plan.append((op, spec, (ps_off, pt_off, cout)))

    vecs = jnp.concatenate(vec_chunks, axis=0)
    return weights, vecs, tuple(plan), k_max


# ------------------------------ parameters ------------------------------

def _fold_bn(gamma, beta, mean, var):
    scale = gamma / jnp.sqrt(var + _BN_EPS)
    shift = beta - mean * scale
    return scale.astype(jnp.float32), shift.astype(jnp.float32)


def init_bn(key, c):
    k1, k2, k3, k4 = jax.random.split(key, 4)
    gamma = 1.0 + 0.1 * jax.random.normal(k1, (c,))
    beta = 0.1 * jax.random.normal(k2, (c,))
    mean = 0.1 * jax.random.normal(k3, (c,))
    var = 1.0 + 0.1 * jnp.abs(jax.random.normal(k4, (c,)))
    return _fold_bn(gamma, beta, mean, var)


def init_convblock(key, cin, cout, kh, kw):
    kb, kwt, kbias = jax.random.split(key, 3)
    scale, shift = init_bn(kb, cin)
    fan_in = cin * kh * kw
    w = (jax.random.normal(kwt, (kh, kw, cin, cout)) / jnp.sqrt(fan_in)).astype(jnp.float32)
    b = (0.01 * jax.random.normal(kbias, (cout,))).astype(jnp.float32)
    return {"scale": scale, "shift": shift, "w": w, "b": b}


def init_dart_params(key, cin, cout):
    keys = iter(jax.random.split(key, 18))
    conv_branches = [
        [init_convblock(next(keys), cin, 16, 1, 1),
         init_convblock(next(keys), 16, 32, 3, 3),
         init_convblock(next(keys), 32, cout, 3, 3)],
        [init_convblock(next(keys), cin, 16, 1, 1),
         init_convblock(next(keys), 16, 32, 5, 5),
         init_convblock(next(keys), 32, cout, 5, 5)],
        [init_convblock(next(keys), cin, 16, 1, 1),
         init_convblock(next(keys), 16, 32, 7, 7),
         init_convblock(next(keys), 32, cout, 7, 7)],
        [init_convblock(next(keys), cin, 16, 1, 1),
         init_convblock(next(keys), 16, 32, 1, 7),
         init_convblock(next(keys), 32, cout, 7, 1)],
    ]
    pool_branches = []
    for _ in _POOL_OPS:                               # l2_5, l2_6, l2_7
        cb = init_convblock(next(keys), cin, cout, 1, 1)
        bscale, bshift = init_bn(next(keys), cout)
        pool_branches.append({"cb": cb, "bn_scale": bscale, "bn_shift": bshift})
    return {"conv_branches": conv_branches, "pool_branches": pool_branches}


# ------------------------------ forward ------------------------------

@jax.jit
def _dart_forward_jit(params, alpha, x_nchw):
    n, cin, h, w = x_nchw.shape
    cout = params["conv_branches"][0][-1]["w"].shape[-1]
    hp, wp = h + 2 * _HALO, w + 2 * _HALO
    r = n * hp * wp
    rp = ((r + 127) // 128) * 128                     # lane-dense row count

    # Channel-major, framed, flattened, lane-padded activation: (Cin, Rp).
    xc = jnp.transpose(x_nchw.astype(jnp.float32), (1, 0, 2, 3))
    xc = jnp.pad(xc, ((0, 0), (0, 0), (_HALO, _HALO), (_HALO, _HALO)))
    xflat = jnp.pad(xc.reshape(cin, r), ((0, 0), (0, rp - r)))

    # Validity mask over the framed/flattened layout (1 inside the HxW image).
    yy = jnp.arange(hp)[:, None]
    xx = jnp.arange(wp)[None, :]
    m2d = (yy >= _HALO) & (yy < _HALO + h) & (xx >= _HALO) & (xx < _HALO + w)
    maskf = jnp.broadcast_to(m2d[None], (n, hp, wp)).astype(jnp.float32).reshape(1, r)
    maskf = jnp.pad(maskf, ((0, 0), (0, rp - r)))

    prob = jax.nn.softmax(alpha.astype(jnp.float32), axis=-1)
    weights, vecs, plan, k_max = _pack_params(params, prob)

    kern = functools.partial(_dart_kernel, plan=plan, n_w=len(weights), wp=wp, rp=rp)
    out_flat = pl.pallas_call(
        kern,
        out_shape=jax.ShapeDtypeStruct((cout, rp), jnp.float32),
        in_specs=[_VMEM] * (3 + len(weights)),
        out_specs=_VMEM,
        scratch_shapes=[pltpu.VMEM((k_max, rp), jnp.bfloat16)],   # im2col scratch
    )(maskf, vecs, xflat, *weights)

    out = out_flat[:, :r].reshape(cout, n, hp, wp)[:, :, _HALO:_HALO + h,
                                                   _HALO:_HALO + w]
    return jnp.transpose(out, (1, 0, 2, 3))           # back to NCHW


def dart_choice_forward(params, alpha, x_nchw):
    _roll_sign()      # resolve pltpu.roll convention eagerly, outside the jit trace
    return _dart_forward_jit(params, alpha, x_nchw)


if __name__ == "__main__":
    key = jax.random.PRNGKey(0)
    N, CIN, H, W, COUT = 2, 4, 16, 16, 8
    kx, ka, kp = jax.random.split(key, 3)
    x = jax.random.normal(kx, (N, CIN, H, W), jnp.float32)
    alpha = jax.random.normal(ka, (7,), jnp.float32)
    params = init_dart_params(kp, CIN, COUT)

    out = dart_choice_forward(params, alpha, x)
    out = jax.block_until_ready(out)
    assert out.shape == (N, COUT, H, W)
    assert bool(jnp.all(jnp.isfinite(out)))
    print("KERNEL_OK")
</pallas_src>

<mosaic_0001>
module attributes {stable_mosaic.version = 11 : i64} {
  func.func @k(%arg0: memref<8x128xf32, #tpu.memory_space<vmem>>, %arg1: memref<8x128xf32, #tpu.memory_space<vmem>>) attributes {dimension_semantics = [], scalar_prefetch = 0 : i64, scratch_operands = 0 : i64, tpu.core_type = #tpu.core_type<tc>} {
    %c0 = arith.constant 0 : index
    %c0_0 = arith.constant 0 : index
    %0 = vector.load %arg0[%c0, %c0_0] : memref<8x128xf32, #tpu.memory_space<vmem>>, vector<8x128xf32>
    %c1_i32 = arith.constant 1 : i32
    %1 = tpu.dynamic_rotate %0 by %c1_i32 dim 1 : vector<8x128xf32>, i32 -> vector<8x128xf32>
    %c0_1 = arith.constant 0 : index
    %c0_2 = arith.constant 0 : index
    %2 = vector.load %arg1[%c0_1, %c0_2] : memref<8x128xf32, #tpu.memory_space<vmem>>, vector<8x128xf32>
    tpu.vector_store %arg1[%c0_1, %c0_2], %1 {strides = array<i32>} : memref<8x128xf32, #tpu.memory_space<vmem>>, vector<8x128xf32>,
    return
  }
}

</mosaic_0001>

<llo_original>
// kernel: tpu_custom_call.1
$region0: #{tpu_custom_call.1}
  #allocation0 [shape = 'u32[]', space=smem, size = 0x4, offset = 0x4, fixed_abs, tag = 'smem constant byte address 0x4 - core index']
  #allocation1 [shape = 'u32[144,128]{1,0:T(1,128)}', space=vmem, size = 0x12000, scoped, tag = 'internal scratch']
  %s0 = inlined_call_operand.hbm [shape: f32[8,128], index: 0, kind: input, shape index: {}]
  %s1 = inlined_call_operand.hbm [shape: f32[8,128], index: 1, kind: output, shape index: {}]
  %s2 = sld [smem:[#allocation0]]
  $region18: #{tpu_custom_call.1} parent=0
    _
  %s4 = ssub.s32 1, %s2
  %s5 = scalar_select 0, %s4, %s2
  $region1: #{tpu_custom_call.1} parent=0
    #allocation2 [shape = 'u8[4096]{0}', space=vmem, size = 0x1000, scoped, tag = 'input window, operand 0, single buffered']
    #allocation3 [shape = 's32[1]{0}', space=sflag, size = 0x4, scoped, tag = 'scoped memory for tpu_custom_call.1']
    #allocation4 [shape = 's32[1]{0}', space=sflag, size = 0x4, scoped, tag = 'scoped memory for tpu_custom_call.1']
    #allocation5 [shape = 'u8[4096]{0}', space=vmem, size = 0x1000, scoped, tag = 'output window, operand 0, single buffered']
    %6 = vsyncpa [#allocation3], 0
    %7 = vsyncpa [#allocation4], 0
    // Predicated region
    $region2: #{tpu_custom_call.1} parent=1 // pred_check
      _
    $region3: #{tpu_custom_call.1} parent=1 // pred_check_branch
      %9 = sbr.rel (0) target = $region5
    $region4: #{tpu_custom_call.1} parent=1 // pred_region
      %s11 = ssub.s32 128, 128
      %12 = vsyncadd [#allocation3], %s11
      %s14 = sshll.u32 [#allocation2], 4
      %s15 = int_to_ptr.vmem [resolvable:$true] %s14
      %17 = dma.hbm_to_vmem [thread:$0]  %s0, 128, %s15, [#allocation3]
    $region5: #{tpu_custom_call.1} parent=1 // pred_fallthru
      _
    // Predicated region
    $region6: #{tpu_custom_call.1} parent=1 // pred_check
      _
    $region7: #{tpu_custom_call.1} parent=1 // pred_check_branch
      %19 = sbr.rel (0) target = $region9
    $region8: #{tpu_custom_call.1} parent=1 // pred_region
      %20 = dma.done [#allocation3], 128
    $region9: #{tpu_custom_call.1} parent=1 // pred_fallthru
      _
    %v21 = vld [vmem:[#allocation2] sm:$0xff]
    %22 = vrot.lane.b32.xlu0 %v21, 1
    %v23 = vpop.permute.xlu0 %22
    %24 = vst [vmem:[#allocation5] sm:$0xff] %v23
    // Predicated region
    $region10: #{tpu_custom_call.1} parent=1 // pred_check
      _
    $region11: #{tpu_custom_call.1} parent=1 // pred_check_branch
      %26 = sbr.rel (0) target = $region13
    $region12: #{tpu_custom_call.1} parent=1 // pred_region
      %s28 = ssub.s32 128, 128
      %29 = vsyncadd [#allocation4], %s28
      %s31 = sshll.u32 [#allocation5], 4
      %s32 = int_to_ptr.vmem [resolvable:$true] %s31
      %34 = dma.vmem_to_hbm [thread:$0]  %s32, 128, %s1, [#allocation4]
    $region13: #{tpu_custom_call.1} parent=1 // pred_fallthru
      _
    // Predicated region
    $region14: #{tpu_custom_call.1} parent=1 // pred_check
      _
    $region15: #{tpu_custom_call.1} parent=1 // pred_check_branch
      %36 = sbr.rel (0) target = $region17
    $region16: #{tpu_custom_call.1} parent=1 // pred_region
      %37 = dma.done [#allocation4], 128
    $region17: #{tpu_custom_call.1} parent=1 // pred_fallthru
      _
    %38 = vsyncpa [#allocation3], 1
    %39 = vsyncpa [#allocation4], 1

</llo_original>
